<compile_context>
chip_gen: v6e
topology: v6e:2x2x1
jax: 0.10.0
libtpu: 0.0.40
codegen_flags: <defaults>
</compile_context>

<pallas_src>
import functools

import jax
import jax.numpy as jnp
from jax import lax
from jax.experimental import pallas as pl
from jax.experimental.pallas import tpu as pltpu


def _focal_loss_kernel(logits_ref, targets_ref, out_ref, *, gamma, n_rows, tile_n):
    step = pl.program_id(0)

    x = logits_ref[...].astype(jnp.float32)            # (tile_n, C)
    t = targets_ref[...]                                 # (tile_n, 1) int32

    # Numerically stable log-sum-exp; single full-tile exp (EUP).
    m = jnp.max(x, axis=-1, keepdims=True)               # (tile_n, 1)
    sum_exp = jnp.sum(jnp.exp(x - m), axis=-1, keepdims=True)

    # Target-logit extraction via lane-iota select (no f32 one-hot multiply).
    col = lax.broadcasted_iota(jnp.int32, x.shape, 1)     # (tile_n, C)
    x_t = jnp.sum(jnp.where(col == t, x, 0.0), axis=-1, keepdims=True)

    ce = jnp.log(sum_exp) + m - x_t                       # per-sample cross entropy (>= 0)
    pt = jnp.exp(-ce)                                     # per-row EUP exp: tile_n elems only
    q = jnp.maximum(1.0 - pt, 0.0)                        # clamp kills NaN risk for tiny-neg ce

    g = float(gamma)
    if g == 2.0:
        focal = q * q                                     # single VPU multiply
    elif g.is_integer():
        focal = lax.integer_pow(q, int(g))
    else:
        focal = q ** g                                    # non-integer gamma fallback
    f_loss = focal * ce                                   # alpha folded into the wrapper scale

    # Mask rows of the last (partial) tile that fall past N (before the reduction!).
    row = lax.broadcasted_iota(jnp.int32, f_loss.shape, 0) + step * tile_n
    f_loss = jnp.where(row < n_rows, f_loss, 0.0)

    # Per-program partial sum, written as a lane-dense (1, 8, 128) slab.
    partial = jnp.sum(f_loss, axis=0, keepdims=True)      # (1, 1)
    out_ref[...] = jnp.broadcast_to(partial.reshape(1, 1, 1), (1, 8, 128))


def focal_loss(logits, targets, *, gamma=2.0, alpha=0.4, max_tile_rows=None):
    """Focal loss with mean reduction. logits: (N, C) float, targets: (N,) int."""
    n, c = logits.shape
    targets_2d = targets.astype(jnp.int32).reshape(n, 1)

    # Generation-aware VMEM budget (v7x: 64 MiB physical; v5e/v6e: 128 MiB physical).
    try:
        vmem_cap = int(pltpu.get_tpu_info().vmem_capacity_bytes)
    except Exception:
        vmem_cap = 64 * 1024 * 1024                       # conservative fallback (v7x-sized)
    if vmem_cap >= 96 * 1024 * 1024:
        vmem_limit = 64 * 1024 * 1024                     # v5e / v6e: room for bigger blocks
    else:
        vmem_limit = 40 * 1024 * 1024                     # v7x: stay well inside 64 MiB
    budget = vmem_limit - 8 * 1024 * 1024                 # headroom for compiler scratch

    # Per-row VMEM cost:
    #   2x double-buffered logits block
    # + 2x lane-padded (row, 1) int32 targets block (~512 B/row)
    # + ~3 materialized full-tile f32 temporaries (exp(x-m), where-select, iota)
    # + ~2 KiB/row slack for lane-padded (tile_n, 1) row vectors.
    bytes_per_row = 2 * (c * logits.dtype.itemsize + 512) + 3 * c * 4 + 2048
    tile_n = int(budget // bytes_per_row) // 8 * 8
    tile_n = max(8, min(tile_n, 32768))
    if max_tile_rows is not None:
        tile_n = max(8, min(tile_n, int(max_tile_rows) // 8 * 8))
    if tile_n >= n:
        tile_n = n                        # single full-extent block (always layout-legal)
        grid_n = 1
    else:
        grid_n = pl.cdiv(n, tile_n)       # tile_n is a multiple of 8 here

    kernel = functools.partial(
        _focal_loss_kernel, gamma=float(gamma), n_rows=n, tile_n=tile_n,
    )

    cost = pl.CostEstimate(
        flops=6 * n * c,
        transcendentals=n * c + 2 * n,
        bytes_accessed=n * c * logits.dtype.itemsize + n * 4 + grid_n * 8 * 128 * 4,
    )

    partials = pl.pallas_call(
        kernel,
        out_shape=jax.ShapeDtypeStruct((grid_n, 8, 128), jnp.float32),
        grid_spec=pltpu.PrefetchScalarGridSpec(
            num_scalar_prefetch=0,
            grid=(grid_n,),
            in_specs=[
                pl.BlockSpec((tile_n, c), lambda i: (i, 0)),      # logits row-tile
                pl.BlockSpec((tile_n, 1), lambda i: (i, 0)),      # targets row-tile
            ],
            out_specs=pl.BlockSpec((1, 8, 128), lambda i: (i, 0, 0)),  # per-program partial
        ),
        compiler_params=pltpu.CompilerParams(
            dimension_semantics=("parallel",),                    # independent outputs -> 2 TCs on v7x
            vmem_limit_bytes=vmem_limit,
        ),
        cost_estimate=cost,
    )(logits, targets_2d)

    # Tree-style final reduction of partial sums + alpha / mean scaling in the wrapper.
    return jnp.sum(partials[:, 0, 0]) * jnp.float32(alpha / n)


def _focal_loss_ref(logits, targets, *, gamma=2.0, alpha=0.4):
    log_probs = jax.nn.log_softmax(logits.astype(jnp.float32), axis=-1)
    ce = -jnp.take_along_axis(log_probs, targets[:, None].astype(jnp.int32), axis=-1)[:, 0]
    pt = jnp.exp(-ce)
    return jnp.mean(alpha * (1.0 - pt) ** gamma * ce)


if __name__ == "__main__":
    key = jax.random.PRNGKey(0)
    k_logits, k_targets, k_logits2, k_targets2 = jax.random.split(key, 4)

    # Case 1: small synthetic shapes, single block (batch=8, num_classes=32).
    N, C = 8, 32
    logits = jax.random.normal(k_logits, (N, C), dtype=jnp.float32)
    targets = jax.random.randint(k_targets, (N,), 0, C, dtype=jnp.int32)

    loss = focal_loss(logits, targets, gamma=2.0, alpha=0.4)
    loss = jax.block_until_ready(loss)
    ref = _focal_loss_ref(logits, targets, gamma=2.0, alpha=0.4)
    assert jnp.allclose(loss, ref, rtol=1e-5, atol=1e-6), (loss, ref)

    # Case 2: exercise the tiled / partial-sum path + partial-tile masking
    # (N=20 with an 8-row tile -> grid of 3 parallel programs, last tile has 4 valid rows).
    N2, C2 = 20, 32
    logits2 = jax.random.normal(k_logits2, (N2, C2), dtype=jnp.float32)
    targets2 = jax.random.randint(k_targets2, (N2,), 0, C2, dtype=jnp.int32)

    loss2 = focal_loss(logits2, targets2, gamma=2.0, alpha=0.4, max_tile_rows=8)
    loss2 = jax.block_until_ready(loss2)
    ref2 = _focal_loss_ref(logits2, targets2, gamma=2.0, alpha=0.4)
    assert jnp.allclose(loss2, ref2, rtol=1e-5, atol=1e-6), (loss2, ref2)

    # Case 3: large cross-entropy rows (pt underflows to 0, q clamps to 1).
    logits3 = jnp.zeros((8, 32), jnp.float32).at[:, 0].set(60.0)
    targets3 = jnp.full((8,), 5, dtype=jnp.int32)
    loss3 = jax.block_until_ready(focal_loss(logits3, targets3, gamma=2.0, alpha=0.4))
    ref3 = _focal_loss_ref(logits3, targets3, gamma=2.0, alpha=0.4)
    assert jnp.allclose(loss3, ref3, rtol=1e-5, atol=1e-6), (loss3, ref3)

    print("KERNEL_OK")
</pallas_src>

<mosaic_0001>
module attributes {stable_mosaic.version = 11 : i64} {
  func.func @_focal_loss_kernel(%arg0: i32, %arg1: memref<8x32xf32, #tpu.memory_space<vmem>>, %arg2: memref<8x1xi32, #tpu.memory_space<vmem>>, %arg3: memref<1x8x128xf32, #tpu.memory_space<vmem>>) attributes {dimension_semantics = [#tpu.dimension_semantics<parallel>], iteration_bounds = array<i64: 1>, scalar_prefetch = 0 : i64, scratch_operands = 0 : i64, tpu.core_type = #tpu.core_type<tc>, window_params = [{transform_indices = @transform_0, window_bounds = array<i64: 8, 32>}, {transform_indices = @transform_1, window_bounds = array<i64: 8, 1>}, {transform_indices = @transform_2, window_bounds = array<i64: 1, 8, 128>}]} {
    %c0 = arith.constant 0 : index
    %c0_0 = arith.constant 0 : index
    %0 = vector.load %arg1[%c0, %c0_0] : memref<8x32xf32, #tpu.memory_space<vmem>>, vector<8x32xf32>
    %c0_1 = arith.constant 0 : index
    %c0_2 = arith.constant 0 : index
    %1 = vector.load %arg2[%c0_1, %c0_2] : memref<8x1xi32, #tpu.memory_space<vmem>>, vector<8x1xi32>
    %cst = arith.constant dense<0xFF800000> : vector<8xf32>
    %2 = vector.multi_reduction <maximumf>, %0, %cst [1] : vector<8x32xf32> to vector<8xf32>
    %3 = vector.shape_cast %2 : vector<8xf32> to vector<8x1xf32>
    %4 = vector.broadcast %3 : vector<8x1xf32> to vector<8x32xf32>
    %5 = arith.subf %0, %4 : vector<8x32xf32>
    %6 = math.exp %5 : vector<8x32xf32>
    %cst_3 = arith.constant dense<0.000000e+00> : vector<8xf32>
    %7 = vector.multi_reduction <add>, %6, %cst_3 [1] : vector<8x32xf32> to vector<8xf32>
    %8 = vector.shape_cast %7 : vector<8xf32> to vector<8x1xf32>
    %9 = tpu.iota {dimensions = array<i32: 1>} : vector<8x32xi32>
    %10 = vector.broadcast %1 : vector<8x1xi32> to vector<8x32xi32>
    %11 = arith.cmpi eq, %9, %10 : vector<8x32xi32>
    %cst_4 = arith.constant 0.000000e+00 : f32
    %12 = vector.broadcast %cst_4 : f32 to vector<8x32xf32>
    %13 = arith.select %11, %0, %12 : vector<8x32xi1>, vector<8x32xf32>
    %cst_5 = arith.constant dense<0.000000e+00> : vector<8xf32>
    %14 = vector.multi_reduction <add>, %13, %cst_5 [1] : vector<8x32xf32> to vector<8xf32>
    %15 = vector.shape_cast %14 : vector<8xf32> to vector<8x1xf32>
    %16 = math.log %8 : vector<8x1xf32>
    %17 = arith.addf %16, %3 : vector<8x1xf32>
    %18 = arith.subf %17, %15 : vector<8x1xf32>
    %cst_6 = arith.constant 0.000000e+00 : f32
    %19 = vector.broadcast %cst_6 : f32 to vector<8x1xf32>
    %20 = arith.subf %19, %18 : vector<8x1xf32>
    %21 = math.exp %20 : vector<8x1xf32>
    %cst_7 = arith.constant 1.000000e+00 : f32
    %22 = vector.broadcast %cst_7 : f32 to vector<8x1xf32>
    %23 = arith.subf %22, %21 : vector<8x1xf32>
    %cst_8 = arith.constant 0.000000e+00 : f32
    %24 = vector.broadcast %cst_8 : f32 to vector<8x1xf32>
    %25 = arith.maximumf %23, %24 : vector<8x1xf32>
    %26 = arith.mulf %25, %25 : vector<8x1xf32>
    %27 = arith.mulf %26, %18 : vector<8x1xf32>
    %28 = tpu.iota {dimensions = array<i32: 0>} : vector<8x1xi32>
    %c8_i32 = arith.constant 8 : i32
    %29 = arith.muli %arg0, %c8_i32 : i32
    %30 = vector.broadcast %29 : i32 to vector<8x1xi32>
    %31 = arith.addi %28, %30 : vector<8x1xi32>
    %c8_i32_9 = arith.constant 8 : i32
    %32 = vector.broadcast %c8_i32_9 : i32 to vector<8x1xi32>
    %33 = arith.cmpi slt, %31, %32 : vector<8x1xi32>
    %cst_10 = arith.constant 0.000000e+00 : f32
    %34 = vector.broadcast %cst_10 : f32 to vector<8x1xf32>
    %35 = arith.select %33, %27, %34 : vector<8x1xi1>, vector<8x1xf32>
    %cst_11 = arith.constant dense<0.000000e+00> : vector<1xf32>
    %36 = vector.multi_reduction <add>, %35, %cst_11 [0] : vector<8x1xf32> to vector<1xf32>
    %37 = vector.shape_cast %36 : vector<1xf32> to vector<1x1xf32>
    %38 = vector.shape_cast %37 : vector<1x1xf32> to vector<1x1x1xf32>
    %39 = vector.shape_cast %38 : vector<1x1x1xf32> to vector<1x1x1xf32>
    %40 = vector.broadcast %39 : vector<1x1x1xf32> to vector<1x8x128xf32>
    %c0_12 = arith.constant 0 : index
    %c0_13 = arith.constant 0 : index
    %c0_14 = arith.constant 0 : index
    %41 = vector.load %arg3[%c0_12, %c0_13, %c0_14] : memref<1x8x128xf32, #tpu.memory_space<vmem>>, vector<1x8x128xf32>
    tpu.vector_store %arg3[%c0_12, %c0_13, %c0_14], %40 {strides = array<i32>} : memref<1x8x128xf32, #tpu.memory_space<vmem>>, vector<1x8x128xf32>,
    return
  }
  func.func @transform_0(%arg0: i32) -> (i32, i32) {
    %c0_i32 = arith.constant 0 : i32
    %c0_i32_0 = arith.constant 0 : i32
    return %arg0, %c0_i32 : i32, i32
  }
  func.func @transform_1(%arg0: i32) -> (i32, i32) {
    %c0_i32 = arith.constant 0 : i32
    %c0_i32_0 = arith.constant 0 : i32
    return %arg0, %c0_i32 : i32, i32
  }
  func.func @transform_2(%arg0: i32) -> (i32, i32, i32) {
    %c0_i32 = arith.constant 0 : i32
    %c0_i32_0 = arith.constant 0 : i32
    %c0_i32_1 = arith.constant 0 : i32
    return %arg0, %c0_i32, %c0_i32_0 : i32, i32, i32
  }
}

</mosaic_0001>

<llo_original>
// kernel: tpu_custom_call.1
$region0: #{tpu_custom_call.1}
  #allocation0 [shape = 'u32[]', space=smem, size = 0x4, offset = 0x4, fixed_abs, tag = 'smem constant byte address 0x4 - core index']
  #allocation1 [shape = 'u32[144,128]{1,0:T(1,128)}', space=vmem, size = 0x12000, scoped, tag = 'internal scratch']
  %s0 = inlined_call_operand.vmem [shape: f32[8,32], index: 0, kind: input, shape index: {}]
  %s1 = inlined_call_operand.vmem [shape: s32[8,1], index: 1, kind: input, shape index: {}]
  %s2 = inlined_call_operand.hbm [shape: f32[1,8,128], index: 2, kind: output, shape index: {}]
  %s3 = sld [smem:[#allocation0]]
  $region18: #{tpu_custom_call.1} parent=0
    _
  %s5 = ssub.s32 1, %s3
  %s6 = scalar_select 0, %s5, %s3
  $region1: #{tpu_custom_call.1} parent=0
    #allocation2 [shape = 'u8[4096]{0}', space=vmem, size = 0x1000, scoped, tag = 'output window, operand 0, single buffered']
    #allocation3 [shape = 's32[1]{0}', space=sflag, size = 0x4, scoped, tag = 'scoped memory for tpu_custom_call.1']
    %7 = vsyncpa [#allocation3], 0
    // Predicated region
    $region2: #{tpu_custom_call.1} parent=1 // pred_check
      _
    $region3: #{tpu_custom_call.1} parent=1 // pred_check_branch
      %9 = sbr.rel (0) target = $region5
    $region4: #{tpu_custom_call.1} parent=1 // pred_region
      _
    $region5: #{tpu_custom_call.1} parent=1 // pred_fallthru
      _
    // Predicated region
    $region6: #{tpu_custom_call.1} parent=1 // pred_check
      _
    $region7: #{tpu_custom_call.1} parent=1 // pred_check_branch
      %11 = sbr.rel (0) target = $region9
    $region8: #{tpu_custom_call.1} parent=1 // pred_region
      _
    $region9: #{tpu_custom_call.1} parent=1 // pred_fallthru
      _
    %v12 = vld [vmem:[%s0] sm:$0xff]
    %v13 = vld [vmem:[%s1] sm:$0xff]
    %vm14 = vcmask 261120
    %v15 = vsel %vm14, %v12, -inf
    %16 = vmax.xlane.f32.xlu0 %v15
    %v17 = vpop.xlane.xlu0 %16
    %v18 = vsub.f32 %v12, %v17
    %v19 = vmul.f32 %v18, 1.442695
    %v20 = vpow.pop %v19
    %v21 = vsel %vm14, %v20, 0.0
    %22 = vadd.xlane.f32.xlu0 %v21
    %v23 = vpop.xlane.xlu0 %22
    %v24 = vlaneseq
    %v25 = vand.u32 %v24, 127
    %26 = vset.pattern.permute.xlu0 0
    %27 = vperm.xlu0 %26, %v13
    %v28 = vpop.permute.xlu0 %27
    %vm29 = vcmp.eq.s32.totalorder %v25, %v28
    %v30 = vsel %vm29, %v12, 0.0
    %v31 = vsel %vm14, %v30, 0.0
    %32 = vadd.xlane.f32.xlu0 %v31
    %v33 = vpop.xlane.xlu0 %32
    %v34 = vlog2.pop %v23
    %v35 = vmul.f32 %v34, 0.6931472
    %v36 = vadd.f32 %v35, %v17
    %v37 = vsub.f32 %v36, %v33
    %v38 = vsub.f32 0.0, %v37
    %v39 = vmul.f32 %v38, 1.442695
    %v40 = vpow.pop %v39
    %v41 = vsub.f32 1.0, %v40
    %v42 = vmax.f32 %v41, 0.0
    %v43 = vmul.f32 %v42, %v42
    %v44 = vmul.f32 %v43, %v37
    %v45 = vlaneseq
    %v46 = vshrl.u32 %v45, 7
    %s47 = smul.u32 0, 8
    %v48 = vstv %s47
    %v49 = vadd.s32 %v46, %v48
    %vm50 = vcmp.lt.s32.totalorder %v49, 8
    %v51 = vsel %vm50, %v44, 0.0
    %v52 = vrot.slane %v51, 4
    %v53 = vadd.f32 %v51, %v52
    %v54 = vrot.slane %v53, 2
    %v55 = vadd.f32 %v53, %v54
    %v56 = vrot.slane %v55, 1
    %v57 = vadd.f32 %v55, %v56
    %58 = vst [vmem:[#allocation2] sm:$0xff] %v57
    // Predicated region
    $region10: #{tpu_custom_call.1} parent=1 // pred_check
      _
    $region11: #{tpu_custom_call.1} parent=1 // pred_check_branch
      %60 = sbr.rel (0) target = $region13
    $region12: #{tpu_custom_call.1} parent=1 // pred_region
      %s62 = ssub.s32 128, 128
      %63 = vsyncadd [#allocation3], %s62
      %s65 = sshll.u32 [#allocation2], 4
      %s66 = int_to_ptr.vmem [resolvable:$true] %s65
      %68 = dma.vmem_to_hbm [thread:$0]  %s66, 128, %s2, [#allocation3]
    $region13: #{tpu_custom_call.1} parent=1 // pred_fallthru
      _
    // Predicated region
    $region14: #{tpu_custom_call.1} parent=1 // pred_check
      _
    $region15: #{tpu_custom_call.1} parent=1 // pred_check_branch
      %70 = sbr.rel (0) target = $region17
    $region16: #{tpu_custom_call.1} parent=1 // pred_region
      %71 = dma.done [#allocation3], 128
    $region17: #{tpu_custom_call.1} parent=1 // pred_fallthru
      _
    %72 = vsyncpa [#allocation3], 1

</llo_original>
